<compile_context>
chip_gen: v7x
topology: tpu7x:2x2x1
jax: 0.10.0
libtpu: 0.0.40
codegen_flags: <defaults>
</compile_context>

<pallas_src>
import jax
import jax.numpy as jnp
from jax.experimental import pallas as pl
from jax.experimental.pallas import tpu as pltpu

_LANE = 128


def _forecast_kernel(
    cov_ref,        # (Tf, C)   forecast-window covariates (shared)
    wloc_ref,       # (C, TN)   lane-tiled AutoNormal loc  for "weight"
    wscale_ref,     # (C, TN)   lane-tiled AutoNormal scale for "weight"
    bloc_ref,       # (1, TN)   lane-tiled loc  for "bias"
    bscale_ref,     # (1, TN)   lane-tiled scale for "bias"
    lsloc_ref,      # (1, TN)   lane-tiled loc  for "log_noise_scale"
    lsscale_ref,    # (1, TN)   lane-tiled scale for "log_noise_scale"
    eps_w_ref,      # (C, TN)   packed standard-normal draws (all particles)
    eps_b_ref,      # (1, TN)
    eps_ls_ref,     # (1, TN)
    eps_obs_ref,    # (Tf, TN)  packed observation-noise draws
    out_ref,        # (Tf, TN)  lane-dense output slab
):
    # --- guide: reparameterized samples for every particle in this lane block
    w = wloc_ref[...] + wscale_ref[...] * eps_w_ref[...]                  # (C, TN)
    b = bloc_ref[...] + bscale_ref[...] * eps_b_ref[...]                  # (1, TN)
    sigma = jnp.exp(lsloc_ref[...] + lsscale_ref[...] * eps_ls_ref[...])  # (1, TN)

    # --- model replay: one lane-dense MXU matmul covers all particles
    pred = jnp.dot(cov_ref[...], w, preferred_element_type=jnp.float32)   # (Tf, TN)

    # --- observation noise for the forecast window (unmasked full-lane store)
    out_ref[...] = pred + b + sigma * eps_obs_ref[...]


def _pad_lanes(x, n_to):
    pad = n_to - x.shape[-1]
    if pad:
        x = jnp.pad(x, [(0, 0)] * (x.ndim - 1) + [(0, pad)])
    return x


def _pick_lane_tile(n_padded):
    for t in (1024, 512, 256, 128):
        if n_padded % t == 0:
            return t
    return n_padded  # unreachable: n_padded is always a multiple of _LANE


def _run_batch_impl(cov_future, params, eps_w, eps_b, eps_ls, eps_obs):
    """All-particles-in-lanes pallas_call. Returns (S, Tf, D) samples."""
    S, C, D = eps_w.shape
    Tf = cov_future.shape[0]
    N = S * D
    Np = max(_LANE, -(-N // _LANE) * _LANE)     # pad lanes to multiple of 128
    TN = _pick_lane_tile(Np)

    w_loc, w_scale, b_loc, b_scale, ls_loc, ls_scale = params

    # Pack particles along lanes: column s*D + d <-> (particle s, obs-dim d).
    eps_w_p = _pad_lanes(jnp.transpose(eps_w, (1, 0, 2)).reshape(C, N), Np)
    eps_b_p = _pad_lanes(eps_b.reshape(1, N), Np)
    eps_ls_p = _pad_lanes(eps_ls.reshape(1, N), Np)
    eps_obs_p = _pad_lanes(jnp.transpose(eps_obs, (1, 0, 2)).reshape(Tf, N), Np)

    # Particle-invariant guide params, lane-tiled; zeros in the padding lanes.
    wloc_t = _pad_lanes(jnp.tile(w_loc, (1, S)), Np)
    wscale_t = _pad_lanes(jnp.tile(w_scale, (1, S)), Np)
    bloc_t = _pad_lanes(jnp.tile(b_loc, (1, S)), Np)
    bscale_t = _pad_lanes(jnp.tile(b_scale, (1, S)), Np)
    lsloc_t = _pad_lanes(jnp.tile(ls_loc, (1, S)), Np)
    lsscale_t = _pad_lanes(jnp.tile(ls_scale, (1, S)), Np)

    shared_cov = pl.BlockSpec((Tf, C), lambda j: (0, 0))
    lane_blk = lambda rows: pl.BlockSpec((rows, TN), lambda j: (0, j))

    out_p = pl.pallas_call(
        _forecast_kernel,
        out_shape=jax.ShapeDtypeStruct((Tf, Np), jnp.float32),
        grid_spec=pltpu.PrefetchScalarGridSpec(
            num_scalar_prefetch=0,
            grid=(Np // TN,),
            in_specs=[
                shared_cov,       # cov_future
                lane_blk(C),      # wloc_t
                lane_blk(C),      # wscale_t
                lane_blk(1),      # bloc_t
                lane_blk(1),      # bscale_t
                lane_blk(1),      # lsloc_t
                lane_blk(1),      # lsscale_t
                lane_blk(C),      # eps_w
                lane_blk(1),      # eps_b
                lane_blk(1),      # eps_ls
                lane_blk(Tf),     # eps_obs
            ],
            out_specs=lane_blk(Tf),
        ),
        compiler_params=pltpu.CompilerParams(
            dimension_semantics=("parallel",)),
    )(cov_future, wloc_t, wscale_t, bloc_t, bscale_t, lsloc_t, lsscale_t,
      eps_w_p, eps_b_p, eps_ls_p, eps_obs_p)

    # Undo the lane packing: (Tf, Np) -> (S, Tf, D).
    out = out_p[:, :N].reshape(Tf, S, D)
    return jnp.transpose(out, (1, 0, 2))


_run_batch = jax.jit(_run_batch_impl)


def forecaster_forward(data, covariates, num_samples, params, key,
                       batch_size=None):
    """JAX/Pallas equivalent of Forecaster.forward.

    Returns samples of shape (num_samples, 1) + data.shape[:-2] + (T2-T1, D).
    """
    assert data.shape[-2] < covariates.shape[-2]
    assert isinstance(num_samples, int) and num_samples > 0

    T1, D = data.shape[-2], data.shape[-1]
    T2, C = covariates.shape[-2], covariates.shape[-1]
    Tf = T2 - T1

    # batch_size handling, mirroring the torch.cat loop in Forecaster.forward.
    # Every sub-batch runs at the full batch_size (one compiled kernel shape);
    # excess samples are sliced off.  Note: batched sampling uses fold_in per
    # sub-batch, so it yields different (but equally valid) Monte-Carlo draws
    # than the unbatched path for the same key.
    if batch_size is not None and batch_size < num_samples:
        num_batches = -(-num_samples // batch_size)
        outs = [
            forecaster_forward(data, covariates, batch_size, params,
                               jax.random.fold_in(key, i))
            for i in range(num_batches)
        ]
        return jnp.concatenate(outs, axis=0)[:num_samples]

    S = num_samples
    cov_future = covariates[T1:T2, :].astype(jnp.float32)

    k_w, k_b, k_ls, k_obs = jax.random.split(key, 4)
    eps_w = jax.random.normal(k_w, (S, C, D), jnp.float32)
    eps_b = jax.random.normal(k_b, (S, D), jnp.float32)
    eps_ls = jax.random.normal(k_ls, (S, D), jnp.float32)
    eps_obs = jax.random.normal(k_obs, (S, Tf, D), jnp.float32)
    # TODO(synk): eps_* could be generated in-kernel (pltpu.prng_seed +
    # pltpu.prng_random_bits) to drop the remaining HBM input traffic; kept
    # host-side so the bit-exact pure-JAX reference check stays valid.

    out = _run_batch(cov_future, params, eps_w, eps_b, eps_ls, eps_obs)
    # docstring: (num_samples, 1, ..., 1) + data.shape[:-2] + (t2-t1, D)
    return out.reshape((S, 1) + data.shape[:-2] + (Tf, D))


def make_guide_params(C, D):
    """Deterministic stand-in for the fitted AutoNormal guide parameters."""
    # TODO(synk): the SVI training loop (DCTAdam + Trace_ELBO) in __init__ has
    # no Pallas equivalent; guide params are synthesized deterministically.
    w_loc = (jnp.arange(C * D, dtype=jnp.float32).reshape(C, D) / (C * D)) - 0.5
    w_scale = jnp.full((C, D), 0.1, jnp.float32)          # init_scale = 0.1
    b_loc = jnp.linspace(-0.2, 0.2, D, dtype=jnp.float32).reshape(1, D)
    b_scale = jnp.full((1, D), 0.1, jnp.float32)
    ls_loc = jnp.full((1, D), -2.0, jnp.float32)          # sigma ~= exp(-2)
    ls_scale = jnp.full((1, D), 0.1, jnp.float32)
    return (w_loc, w_scale, b_loc, b_scale, ls_loc, ls_scale)


def _reference_forward(data, covariates, params, eps_w, eps_b, eps_ls, eps_obs):
    """Pure-JAX reference for correctness checking."""
    T1 = data.shape[-2]
    cov_f = covariates[T1:, :]
    w_loc, w_scale, b_loc, b_scale, ls_loc, ls_scale = params
    w = w_loc[None] + w_scale[None] * eps_w                  # (S, C, D)
    b = b_loc + b_scale * eps_b                              # (S, D)
    sigma = jnp.exp(ls_loc + ls_scale * eps_ls)              # (S, D)
    pred = jnp.einsum("tc,scd->std", cov_f, w) + b[:, None, :]
    return pred + sigma[:, None, :] * eps_obs


if __name__ == "__main__":
    # Small shapes consistent with the module's conventions:
    #   observed duration T1=16, covariate duration T2=24 (forecast 8 steps),
    #   covariate dim C=8, observation dim D=4, num_samples=4.
    T1, T2, C, D = 16, 24, 8, 4
    S = 4

    key = jax.random.PRNGKey(0)
    k_data, k_cov, k_sample = jax.random.split(key, 3)
    data = jax.random.normal(k_data, (T1, D), jnp.float32)
    covariates = jax.random.normal(k_cov, (T2, C), jnp.float32)
    params = make_guide_params(C, D)

    out = forecaster_forward(data, covariates, S, params, k_sample)
    out = jax.block_until_ready(out)
    assert out.shape == (S, 1, T2 - T1, D), out.shape

    # Correctness check against pure-JAX reference (same eps draws).
    k_w, k_b, k_ls, k_obs = jax.random.split(k_sample, 4)
    eps_w = jax.random.normal(k_w, (S, C, D), jnp.float32)
    eps_b = jax.random.normal(k_b, (S, D), jnp.float32)
    eps_ls = jax.random.normal(k_ls, (S, D), jnp.float32)
    eps_obs = jax.random.normal(k_obs, (S, T2 - T1, D), jnp.float32)
    ref = _reference_forward(data, covariates, params, eps_w, eps_b, eps_ls,
                             eps_obs)
    assert jnp.allclose(out[:, 0], ref, atol=1e-5, rtol=1e-5), (
        float(jnp.max(jnp.abs(out[:, 0] - ref))))

    # Exercise the batch_size code path (padded full batches, sliced result).
    out_batched = forecaster_forward(data, covariates, 6, params, k_sample,
                                     batch_size=4)
    out_batched = jax.block_until_ready(out_batched)
    assert out_batched.shape == (6, 1, T2 - T1, D), out_batched.shape

    print("KERNEL_OK")
</pallas_src>

<mosaic_0001>
module attributes {stable_mosaic.version = 11 : i64} {
  func.func @_forecast_kernel(%arg0: i32, %arg1: memref<8x8xf32, #tpu.memory_space<vmem>>, %arg2: memref<8x128xf32, #tpu.memory_space<vmem>>, %arg3: memref<8x128xf32, #tpu.memory_space<vmem>>, %arg4: memref<1x128xf32, #tpu.memory_space<vmem>>, %arg5: memref<1x128xf32, #tpu.memory_space<vmem>>, %arg6: memref<1x128xf32, #tpu.memory_space<vmem>>, %arg7: memref<1x128xf32, #tpu.memory_space<vmem>>, %arg8: memref<8x128xf32, #tpu.memory_space<vmem>>, %arg9: memref<1x128xf32, #tpu.memory_space<vmem>>, %arg10: memref<1x128xf32, #tpu.memory_space<vmem>>, %arg11: memref<8x128xf32, #tpu.memory_space<vmem>>, %arg12: memref<8x128xf32, #tpu.memory_space<vmem>>) attributes {dimension_semantics = [#tpu.dimension_semantics<parallel>], iteration_bounds = array<i64: 1>, scalar_prefetch = 0 : i64, scratch_operands = 0 : i64, tpu.core_type = #tpu.core_type<tc>, window_params = [{pipeline_mode = #tpu.pipeline_mode<synchronous>, transform_indices = @transform_0, window_bounds = array<i64: 8, 8>}, {transform_indices = @transform_1, window_bounds = array<i64: 8, 128>}, {transform_indices = @transform_2, window_bounds = array<i64: 8, 128>}, {transform_indices = @transform_3, window_bounds = array<i64: 1, 128>}, {transform_indices = @transform_4, window_bounds = array<i64: 1, 128>}, {transform_indices = @transform_5, window_bounds = array<i64: 1, 128>}, {transform_indices = @transform_6, window_bounds = array<i64: 1, 128>}, {transform_indices = @transform_7, window_bounds = array<i64: 8, 128>}, {transform_indices = @transform_8, window_bounds = array<i64: 1, 128>}, {transform_indices = @transform_9, window_bounds = array<i64: 1, 128>}, {transform_indices = @transform_10, window_bounds = array<i64: 8, 128>}, {transform_indices = @transform_11, window_bounds = array<i64: 8, 128>}]} {
    %c0 = arith.constant 0 : index
    %c0_0 = arith.constant 0 : index
    %0 = vector.load %arg2[%c0, %c0_0] : memref<8x128xf32, #tpu.memory_space<vmem>>, vector<8x128xf32>
    %c0_1 = arith.constant 0 : index
    %c0_2 = arith.constant 0 : index
    %1 = vector.load %arg3[%c0_1, %c0_2] : memref<8x128xf32, #tpu.memory_space<vmem>>, vector<8x128xf32>
    %c0_3 = arith.constant 0 : index
    %c0_4 = arith.constant 0 : index
    %2 = vector.load %arg8[%c0_3, %c0_4] : memref<8x128xf32, #tpu.memory_space<vmem>>, vector<8x128xf32>
    %3 = arith.mulf %1, %2 : vector<8x128xf32>
    %4 = arith.addf %0, %3 : vector<8x128xf32>
    %c0_5 = arith.constant 0 : index
    %c0_6 = arith.constant 0 : index
    %5 = vector.load %arg4[%c0_5, %c0_6] : memref<1x128xf32, #tpu.memory_space<vmem>>, vector<1x128xf32>
    %c0_7 = arith.constant 0 : index
    %c0_8 = arith.constant 0 : index
    %6 = vector.load %arg5[%c0_7, %c0_8] : memref<1x128xf32, #tpu.memory_space<vmem>>, vector<1x128xf32>
    %c0_9 = arith.constant 0 : index
    %c0_10 = arith.constant 0 : index
    %7 = vector.load %arg9[%c0_9, %c0_10] : memref<1x128xf32, #tpu.memory_space<vmem>>, vector<1x128xf32>
    %8 = arith.mulf %6, %7 : vector<1x128xf32>
    %9 = arith.addf %5, %8 : vector<1x128xf32>
    %c0_11 = arith.constant 0 : index
    %c0_12 = arith.constant 0 : index
    %10 = vector.load %arg6[%c0_11, %c0_12] : memref<1x128xf32, #tpu.memory_space<vmem>>, vector<1x128xf32>
    %c0_13 = arith.constant 0 : index
    %c0_14 = arith.constant 0 : index
    %11 = vector.load %arg7[%c0_13, %c0_14] : memref<1x128xf32, #tpu.memory_space<vmem>>, vector<1x128xf32>
    %c0_15 = arith.constant 0 : index
    %c0_16 = arith.constant 0 : index
    %12 = vector.load %arg10[%c0_15, %c0_16] : memref<1x128xf32, #tpu.memory_space<vmem>>, vector<1x128xf32>
    %13 = arith.mulf %11, %12 : vector<1x128xf32>
    %14 = arith.addf %10, %13 : vector<1x128xf32>
    %15 = math.exp %14 : vector<1x128xf32>
    %c0_17 = arith.constant 0 : index
    %c0_18 = arith.constant 0 : index
    %16 = vector.load %arg1[%c0_17, %c0_18] : memref<8x8xf32, #tpu.memory_space<vmem>>, vector<8x8xf32>
    %cst = arith.constant dense<0.000000e+00> : vector<8x128xf32>
    %17 = tpu.matmul %16, %4, %cst {dimension_numbers = #tpu.dot_dimension_numbers<[1], [0], [0], [1], [0, 0, 1, 1], [], []>} : vector<8x8xf32>, vector<8x128xf32>, vector<8x128xf32> -> vector<8x128xf32>
    %18 = vector.broadcast %9 : vector<1x128xf32> to vector<8x128xf32>
    %19 = arith.addf %17, %18 : vector<8x128xf32>
    %c0_19 = arith.constant 0 : index
    %c0_20 = arith.constant 0 : index
    %20 = vector.load %arg11[%c0_19, %c0_20] : memref<8x128xf32, #tpu.memory_space<vmem>>, vector<8x128xf32>
    %21 = vector.broadcast %15 : vector<1x128xf32> to vector<8x128xf32>
    %22 = arith.mulf %21, %20 : vector<8x128xf32>
    %23 = arith.addf %19, %22 : vector<8x128xf32>
    %c0_21 = arith.constant 0 : index
    %c0_22 = arith.constant 0 : index
    %24 = vector.load %arg12[%c0_21, %c0_22] : memref<8x128xf32, #tpu.memory_space<vmem>>, vector<8x128xf32>
    tpu.vector_store %arg12[%c0_21, %c0_22], %23 {strides = array<i32>} : memref<8x128xf32, #tpu.memory_space<vmem>>, vector<8x128xf32>,
    return
  }
  func.func @transform_0(%arg0: i32) -> (i32, i32) {
    %c0_i32 = arith.constant 0 : i32
    %c0_i32_0 = arith.constant 0 : i32
    %c0_i32_1 = arith.constant 0 : i32
    return %c0_i32, %c0_i32_0 : i32, i32
  }
  func.func @transform_1(%arg0: i32) -> (i32, i32) {
    %c0_i32 = arith.constant 0 : i32
    %c0_i32_0 = arith.constant 0 : i32
    return %c0_i32, %arg0 : i32, i32
  }
  func.func @transform_2(%arg0: i32) -> (i32, i32) {
    %c0_i32 = arith.constant 0 : i32
    %c0_i32_0 = arith.constant 0 : i32
    return %c0_i32, %arg0 : i32, i32
  }
  func.func @transform_3(%arg0: i32) -> (i32, i32) {
    %c0_i32 = arith.constant 0 : i32
    %c0_i32_0 = arith.constant 0 : i32
    return %c0_i32, %arg0 : i32, i32
  }
  func.func @transform_4(%arg0: i32) -> (i32, i32) {
    %c0_i32 = arith.constant 0 : i32
    %c0_i32_0 = arith.constant 0 : i32
    return %c0_i32, %arg0 : i32, i32
  }
  func.func @transform_5(%arg0: i32) -> (i32, i32) {
    %c0_i32 = arith.constant 0 : i32
    %c0_i32_0 = arith.constant 0 : i32
    return %c0_i32, %arg0 : i32, i32
  }
  func.func @transform_6(%arg0: i32) -> (i32, i32) {
    %c0_i32 = arith.constant 0 : i32
    %c0_i32_0 = arith.constant 0 : i32
    return %c0_i32, %arg0 : i32, i32
  }
  func.func @transform_7(%arg0: i32) -> (i32, i32) {
    %c0_i32 = arith.constant 0 : i32
    %c0_i32_0 = arith.constant 0 : i32
    return %c0_i32, %arg0 : i32, i32
  }
  func.func @transform_8(%arg0: i32) -> (i32, i32) {
    %c0_i32 = arith.constant 0 : i32
    %c0_i32_0 = arith.constant 0 : i32
    return %c0_i32, %arg0 : i32, i32
  }
  func.func @transform_9(%arg0: i32) -> (i32, i32) {
    %c0_i32 = arith.constant 0 : i32
    %c0_i32_0 = arith.constant 0 : i32
    return %c0_i32, %arg0 : i32, i32
  }
  func.func @transform_10(%arg0: i32) -> (i32, i32) {
    %c0_i32 = arith.constant 0 : i32
    %c0_i32_0 = arith.constant 0 : i32
    return %c0_i32, %arg0 : i32, i32
  }
  func.func @transform_11(%arg0: i32) -> (i32, i32) {
    %c0_i32 = arith.constant 0 : i32
    %c0_i32_0 = arith.constant 0 : i32
    return %c0_i32, %arg0 : i32, i32
  }
}

</mosaic_0001>

<llo_original>
// kernel: _run_batch_impl.1
$region0: #{_run_batch_impl.1}
  #allocation0 [shape = 'u32[]', space=smem, size = 0x4, offset = 0x4, fixed_abs, tag = 'smem constant byte address 0x4 - core index']
  #allocation1 [shape = 'u32[144,128]{1,0:T(1,128)}', space=vmem, size = 0x12000, scoped, tag = 'internal scratch']
  %s0 = inlined_call_operand.vmem [shape: f32[8,8], index: 0, kind: input, shape index: {}]
  %s1 = inlined_call_operand.vmem [shape: f32[8,128], index: 1, kind: input, shape index: {}]
  %s2 = inlined_call_operand.vmem [shape: f32[8,128], index: 2, kind: input, shape index: {}]
  %s3 = inlined_call_operand.vmem [shape: f32[1,128], index: 3, kind: input, shape index: {}]
  %s4 = inlined_call_operand.vmem [shape: f32[1,128], index: 4, kind: input, shape index: {}]
  %s5 = inlined_call_operand.vmem [shape: f32[1,128], index: 5, kind: input, shape index: {}]
  %s6 = inlined_call_operand.vmem [shape: f32[1,128], index: 6, kind: input, shape index: {}]
  %s7 = inlined_call_operand.vmem [shape: f32[8,128], index: 7, kind: input, shape index: {}]
  %s8 = inlined_call_operand.vmem [shape: f32[1,128], index: 8, kind: input, shape index: {}]
  %s9 = inlined_call_operand.vmem [shape: f32[1,128], index: 9, kind: input, shape index: {}]
  %s10 = inlined_call_operand.vmem [shape: f32[8,128], index: 10, kind: input, shape index: {}]
  %s11 = inlined_call_operand.vmem [shape: f32[8,128], index: 11, kind: output, shape index: {}]
  %s12 = sld [smem:[#allocation0]]
  $region54: #{_run_batch_impl.1} parent=0
    _
  %s14 = ssub.s32 1, %s12
  %s15 = scalar_select 0, %s14, %s12
  // Predicated region
  $region2: #{_run_batch_impl.1} parent=0 // pred_check
    _
  $region3: #{_run_batch_impl.1} parent=0 // pred_check_branch
    %17 = sbr.rel (0) target = $region5
  $region4: #{_run_batch_impl.1} parent=0 // pred_region
    _
  $region5: #{_run_batch_impl.1} parent=0 // pred_fallthru
    _
  // Predicated region
  $region6: #{_run_batch_impl.1} parent=0 // pred_check
    _
  $region7: #{_run_batch_impl.1} parent=0 // pred_check_branch
    %19 = sbr.rel (0) target = $region9
  $region8: #{_run_batch_impl.1} parent=0 // pred_region
    _
  $region9: #{_run_batch_impl.1} parent=0 // pred_fallthru
    _
  // Predicated region
  $region10: #{_run_batch_impl.1} parent=0 // pred_check
    _
  $region11: #{_run_batch_impl.1} parent=0 // pred_check_branch
    %21 = sbr.rel (0) target = $region13
  $region12: #{_run_batch_impl.1} parent=0 // pred_region
    _
  $region13: #{_run_batch_impl.1} parent=0 // pred_fallthru
    _
  // Predicated region
  $region14: #{_run_batch_impl.1} parent=0 // pred_check
    _
  $region15: #{_run_batch_impl.1} parent=0 // pred_check_branch
    %23 = sbr.rel (0) target = $region17
  $region16: #{_run_batch_impl.1} parent=0 // pred_region
    _
  $region17: #{_run_batch_impl.1} parent=0 // pred_fallthru
    _
  // Predicated region
  $region18: #{_run_batch_impl.1} parent=0 // pred_check
    _
  $region19: #{_run_batch_impl.1} parent=0 // pred_check_branch
    %25 = sbr.rel (0) target = $region21
  $region20: #{_run_batch_impl.1} parent=0 // pred_region
    _
  $region21: #{_run_batch_impl.1} parent=0 // pred_fallthru
    _
  // Predicated region
  $region22: #{_run_batch_impl.1} parent=0 // pred_check
    _
  $region23: #{_run_batch_impl.1} parent=0 // pred_check_branch
    %27 = sbr.rel (0) target = $region25
  $region24: #{_run_batch_impl.1} parent=0 // pred_region
    _
  $region25: #{_run_batch_impl.1} parent=0 // pred_fallthru
    _
  // Predicated region
  $region26: #{_run_batch_impl.1} parent=0 // pred_check
    _
  $region27: #{_run_batch_impl.1} parent=0 // pred_check_branch
    %29 = sbr.rel (0) target = $region29
  $region28: #{_run_batch_impl.1} parent=0 // pred_region
    _
  $region29: #{_run_batch_impl.1} parent=0 // pred_fallthru
    _
  // Predicated region
  $region30: #{_run_batch_impl.1} parent=0 // pred_check
    _
  $region31: #{_run_batch_impl.1} parent=0 // pred_check_branch
    %31 = sbr.rel (0) target = $region33
  $region32: #{_run_batch_impl.1} parent=0 // pred_region
    _
  $region33: #{_run_batch_impl.1} parent=0 // pred_fallthru
    _
  // Predicated region
  $region34: #{_run_batch_impl.1} parent=0 // pred_check
    _
  $region35: #{_run_batch_impl.1} parent=0 // pred_check_branch
    %33 = sbr.rel (0) target = $region37
  $region36: #{_run_batch_impl.1} parent=0 // pred_region
    _
  $region37: #{_run_batch_impl.1} parent=0 // pred_fallthru
    _
  // Predicated region
  $region38: #{_run_batch_impl.1} parent=0 // pred_check
    _
  $region39: #{_run_batch_impl.1} parent=0 // pred_check_branch
    %35 = sbr.rel (0) target = $region41
  $region40: #{_run_batch_impl.1} parent=0 // pred_region
    _
  $region41: #{_run_batch_impl.1} parent=0 // pred_fallthru
    _
  // Predicated region
  $region42: #{_run_batch_impl.1} parent=0 // pred_check
    _
  $region43: #{_run_batch_impl.1} parent=0 // pred_check_branch
    %37 = sbr.rel (0) target = $region45
  $region44: #{_run_batch_impl.1} parent=0 // pred_region
    _
  $region45: #{_run_batch_impl.1} parent=0 // pred_fallthru
    _
  %v38 = vld [vmem:[%s1] sm:$0xff]
  %v39 = vld [vmem:[%s2] sm:$0xff]
  %v40 = vld [vmem:[%s7] sm:$0xff]
  %v41 = vmul.f32 %v39, %v40
  %v42 = vadd.f32 %v38, %v41
  %v43 = vld [vmem:[%s3] sm:$0x1]
  %v44 = vld [vmem:[%s4] sm:$0x1]
  %v45 = vld [vmem:[%s8] sm:$0x1]
  %v46 = vmul.f32 %v44, %v45
  %v47 = vadd.f32 %v43, %v46
  %v48 = vld [vmem:[%s5] sm:$0x1]
  %v49 = vld [vmem:[%s6] sm:$0x1]
  %v50 = vld [vmem:[%s9] sm:$0x1]
  %v51 = vmul.f32 %v49, %v50
  %v52 = vadd.f32 %v48, %v51
  %v53 = vmul.f32 %v52, 1.442695
  %v54 = vpow.pop %v53
  %v55 = vld [vmem:[%s0] sm:$0xff]
  %v57 = vlaneseq
  %v58 = vshrl.u32 %v57, 7
  %v59 = vsub.s32 0, %v58
  %v60 = vrot.slane %v47, %v59
  %vm62 = vcmask 64512
  %v64 = vsel %vm62, %v55, 0
  %66 = vmatprep.subr.mxu0 0.0
  %67 = vmatpush1.msra.mxu0 %v42
  %68 = vmatprep.subr.mxu0 0.0
  %69 = vmatpush1.msra.mxu0 0.0
  %70 = vmatprep.subr.mxu0 0.0
  %71 = vmatpush1.msra.mxu0 0.0
  %72 = vmatprep.subr.mxu0 0.0
  %73 = vmatpush1.msra.mxu0 0.0
  %74 = vmatprep.subr.mxu0 0.0
  %75 = vmatpush1.msra.mxu0 0.0
  %76 = vmatprep.subr.mxu0 0.0
  %77 = vmatpush1.msra.mxu0 0.0
  %78 = vmatprep.subr.mxu0 0.0
  %79 = vmatpush1.msra.mxu0 0.0
  %80 = vmatprep.subr.mxu0 0.0
  %81 = vmatpush1.msra.mxu0 0.0
  %82 = vmatprep.subr.mxu0 0.0
  %83 = vmatpush1.msra.mxu0 0.0
  %84 = vmatprep.subr.mxu0 0.0
  %85 = vmatpush1.msra.mxu0 0.0
  %86 = vmatprep.subr.mxu0 0.0
  %87 = vmatpush1.msra.mxu0 0.0
  %88 = vmatprep.subr.mxu0 0.0
  %89 = vmatpush1.msra.mxu0 0.0
  %90 = vmatprep.subr.mxu0 0.0
  %91 = vmatpush1.msra.mxu0 0.0
  %92 = vmatprep.subr.mxu0 0.0
  %93 = vmatpush1.msra.mxu0 0.0
  %94 = vmatprep.subr.mxu0 0.0
  %95 = vmatpush1.msra.mxu0 0.0
  %96 = vmatprep.subr.mxu0 0.0
  %97 = vmatpush1.msra.mxu0 0.0
  %98 = vmatprep.subr.mxu0 0.0
  %99 = vmatpush1.msra.mxu0 0.0
  %100 = vmatprep.subr.mxu0 0.0
  %101 = vmatpush1.msra.mxu0 0.0
  %102 = vmatprep.subr.mxu0 0.0
  %103 = vmatpush1.msra.mxu0 0.0
  %104 = vmatprep.subr.mxu0 0.0
  %105 = vmatpush1.msra.mxu0 0.0
  %106 = vmatprep.subr.mxu0 0.0
  %107 = vmatpush1.msra.mxu0 0.0
  %108 = vmatprep.subr.mxu0 0.0
  %109 = vmatpush1.msra.mxu0 0.0
  %110 = vmatprep.subr.mxu0 0.0
  %111 = vmatpush1.msra.mxu0 0.0
  %112 = vmatprep.subr.mxu0 0.0
  %113 = vmatpush1.msra.mxu0 0.0
  %114 = vmatprep.subr.mxu0 0.0
  %115 = vmatpush1.msra.mxu0 0.0
  %116 = vmatprep.subr.mxu0 0.0
  %117 = vmatpush1.msra.mxu0 0.0
  %118 = vmatprep.subr.mxu0 0.0
  %119 = vmatpush1.msra.mxu0 0.0
  %120 = vmatprep.subr.mxu0 0.0
  %121 = vmatpush1.msra.mxu0 0.0
  %122 = vmatprep.subr.mxu0 0.0
  %123 = vmatpush1.msra.mxu0 0.0
  %124 = vmatprep.subr.mxu0 0.0
  %125 = vmatpush1.msra.mxu0 0.0
  %126 = vmatprep.subr.mxu0 0.0
  %127 = vmatpush1.msra.mxu0 0.0
  %128 = vmatprep.subr.mxu0 0.0
  %129 = vmatpush1.msra.mxu0 0.0
  %130 = vmatprep.mubr.f32.mxu0 0.0
  %131 = vmatmul.mubr.f32.gmra.mrb[0].mxu0 %v64
  %v132 = vpop.f32.mrb[0].mxu0
  %v133 = vadd.f32 %v60, %v132
  %v134 = vpop.f32.mrb[0].mxu0
  %135 = vdwg.mxu0
  %v136 = vld [vmem:[%s10] sm:$0xff]
  %v138 = vlaneseq
  %v139 = vshrl.u32 %v138, 7
  %v140 = vsub.s32 0, %v139
  %v141 = vrot.slane %v54, %v140
  %v143 = vmul.f32 %v141, %v136
  %v144 = vadd.f32 %v133, %v143
  %145 = vst [vmem:[%s11] sm:$0xff] %v144
  // Predicated region
  $region46: #{_run_batch_impl.1} parent=0 // pred_check
    _
  $region47: #{_run_batch_impl.1} parent=0 // pred_check_branch
    %147 = sbr.rel (0) target = $region49
  $region48: #{_run_batch_impl.1} parent=0 // pred_region
    _
  $region49: #{_run_batch_impl.1} parent=0 // pred_fallthru
    _
  // Predicated region
  $region50: #{_run_batch_impl.1} parent=0 // pred_check
    _
  $region51: #{_run_batch_impl.1} parent=0 // pred_check_branch
    %149 = sbr.rel (0) target = $region53
  $region52: #{_run_batch_impl.1} parent=0 // pred_region
    _
  $region53: #{_run_batch_impl.1} parent=0 // pred_fallthru
    _

</llo_original>
